<compile_context>
chip_gen: v7x
topology: tpu7x:2x2x1
jax: 0.10.0
libtpu: 0.0.40
codegen_flags: <defaults>
</compile_context>

<pallas_src>
import jax
import jax.numpy as jnp
from jax.experimental import pallas as pl
from jax.experimental.pallas import tpu as pltpu


# --------------------------------- kernel ------------------------------------
def _rope_kernel(x_ref, cos_ref, se_ref, so_ref, o_ref):
    """x_ref / o_ref: (Bt, tL, E).  cos/se/so: (tL, E) float32 tables."""
    E = x_ref.shape[-1]
    cos = cos_ref[...]          # cos(l*theta[e//2])               at every lane
    sin_even = se_ref[...]      # -sin(l*theta[e//2]) at even lanes, 0 at odd
    sin_odd = so_ref[...]       # +sin(l*theta[e//2]) at odd lanes,  0 at even
    for b in range(x_ref.shape[0]):               # static unroll over folded batch
        x = x_ref[b].astype(jnp.float32)          # (tL, E)
        # Neighbour lanes via static XLU rotations (exact; wrap lanes are
        # multiplied by the zero half of the masked sin tables).
        x_next = pltpu.roll(x, shift=E - 1, axis=1)   # lane e -> x[e+1]
        x_prev = pltpu.roll(x, shift=1, axis=1)       # lane e -> x[e-1]
        y = x * cos + x_next * sin_even + x_prev * sin_odd
        o_ref[b] = y.astype(o_ref.dtype)


# ------------------------------- host helpers --------------------------------
def _rope_tables(L, E, base):
    """Full-width (L, E) float32 tables (the analogue of the module's cache).

    cos[l, e]      = cos(l * theta[e // 2])
    sin_even[l, e] = -sin(l * theta[e // 2]) if e even else 0   (weights x[e+1])
    sin_odd[l, e]  = +sin(l * theta[e // 2]) if e odd  else 0   (weights x[e-1])
    """
    theta = jnp.float32(base) ** (-(jnp.arange(0, E, 2, dtype=jnp.float32) / E))
    angles = jnp.arange(L, dtype=jnp.float32)[:, None] * theta[None, :]   # (L, E/2)
    cos = jnp.repeat(jnp.cos(angles), 2, axis=-1)                         # (L, E)
    sin = jnp.repeat(jnp.sin(angles), 2, axis=-1)                         # (L, E)
    lane_is_even = (jnp.arange(E) % 2) == 0
    sin_even = jnp.where(lane_is_even, -sin, 0.0).astype(jnp.float32)
    sin_odd = jnp.where(lane_is_even, 0.0, sin).astype(jnp.float32)
    return cos.astype(jnp.float32), sin_even, sin_odd


def _choose_tiles(B, L, E, itemsize, target_bytes=2 << 20, max_batch_fold=32):
    """Pick (Bt, tL): ~target_bytes per x block, dtype-aware sublane multiple."""
    sub = {4: 8, 2: 16, 1: 32}.get(itemsize, 8)
    row_bytes = max(1, E * itemsize)
    max_rows = max(sub, target_bytes // row_bytes)
    if L <= max_rows:
        tL = L                                           # full seq in one tile
        Bt = int(min(B, max(1, max_rows // max(1, L)), max_batch_fold))
    else:
        tL = int((max_rows // sub) * sub)                # multiple of sublane tile
        Bt = 1
    return Bt, tL


# --------------------------------- wrapper ------------------------------------
def rope(x, base=10000, cache_size=512, *, tile_l=None, tile_b=None):
    """Rotary position embedding on x of shape [..., L, E] (E even)."""
    del cache_size  # the cache is just a memoized table; recomputed for [0, L)
    orig_shape = x.shape
    L, E = x.shape[-2], x.shape[-1]
    assert E % 2 == 0, "RoPE requires an even feature dimension"

    B = 1
    for d in x.shape[:-2]:
        B *= d
    x3 = x.reshape(B, L, E)

    cos, sin_even, sin_odd = _rope_tables(L, E, base)        # (L, E) f32 each

    auto_bt, auto_tl = _choose_tiles(B, L, E, jnp.dtype(x.dtype).itemsize)
    tL = min(int(tile_l) if tile_l is not None else auto_tl, L)
    Bt = min(int(tile_b) if tile_b is not None else auto_bt, B)

    grid = (pl.cdiv(L, tL), pl.cdiv(B, Bt))   # batch innermost -> table blocks reused

    out = pl.pallas_call(
        _rope_kernel,
        out_shape=jax.ShapeDtypeStruct((B, L, E), x.dtype),
        grid=grid,
        in_specs=[
            pl.BlockSpec((Bt, tL, E), lambda l, b: (b, l, 0)),   # x
            pl.BlockSpec((tL, E), lambda l, b: (l, 0)),          # cos
            pl.BlockSpec((tL, E), lambda l, b: (l, 0)),          # -sin @ even lanes
            pl.BlockSpec((tL, E), lambda l, b: (l, 0)),          # +sin @ odd lanes
        ],
        out_specs=pl.BlockSpec((Bt, tL, E), lambda l, b: (b, l, 0)),
        compiler_params=pltpu.CompilerParams(
            dimension_semantics=("parallel", "parallel"),
            vmem_limit_bytes=48 * 1024 * 1024),
    )(x3, cos, sin_even, sin_odd)
    return out.reshape(orig_shape)


# --------------------------- pure-JAX reference -------------------------------
def rope_ref(x, base=10000):
    L, E = x.shape[-2], x.shape[-1]
    theta = jnp.float32(base) ** (-(jnp.arange(0, E, 2, dtype=jnp.float32) / E))
    angles = jnp.arange(L, dtype=jnp.float32)[:, None] * theta[None, :]   # (L, E/2)
    cos, sin = jnp.cos(angles), jnp.sin(angles)
    xs = x.astype(jnp.float32).reshape(*x.shape[:-1], E // 2, 2)
    x0, x1 = xs[..., 0], xs[..., 1]
    y0 = x0 * cos - x1 * sin
    y1 = x1 * cos + x0 * sin
    return jnp.stack([y0, y1], axis=-1).reshape(x.shape).astype(x.dtype)


# ----------------------------------- main -------------------------------------
if __name__ == "__main__":
    key = jax.random.PRNGKey(0)
    k1, k2, k3 = jax.random.split(key, 3)

    # [batch, heads, seq, dim] case
    x4 = jax.random.normal(k1, (2, 4, 8, 64), jnp.float32)
    out4 = jax.block_until_ready(rope(x4))
    ref4 = rope_ref(x4)
    err4 = float(jnp.max(jnp.abs(out4 - ref4)))
    assert jnp.allclose(out4, ref4, atol=1e-5, rtol=1e-5), f"max abs err {err4}"

    # [batch, seq, dim] case, dim = 128
    x3 = jax.random.normal(k2, (3, 16, 128), jnp.float32)
    out3 = jax.block_until_ready(rope(x3))
    ref3 = rope_ref(x3)
    err3 = float(jnp.max(jnp.abs(out3 - ref3)))
    assert jnp.allclose(out3, ref3, atol=1e-5, rtol=1e-5), f"max abs err {err3}"

    # Multi-block grid with a ragged last L-tile, folded batch, bf16 input.
    xb = jax.random.normal(k3, (2, 3, 24, 64), jnp.float32).astype(jnp.bfloat16)
    outb = jax.block_until_ready(rope(xb, tile_l=16, tile_b=2))
    refb = rope_ref(xb.astype(jnp.float32))
    errb = float(jnp.max(jnp.abs(outb.astype(jnp.float32) - refb)))
    assert jnp.allclose(outb.astype(jnp.float32), refb, atol=2e-2, rtol=2e-2), \
        f"max abs err {errb}"

    print("KERNEL_OK")
</pallas_src>

<mosaic_0001>
module attributes {stable_mosaic.version = 11 : i64} {
  func.func @_rope_kernel(%arg0: i32, %arg1: i32, %arg2: memref<8x8x64xf32, #tpu.memory_space<vmem>>, %arg3: memref<8x64xf32, #tpu.memory_space<vmem>>, %arg4: memref<8x64xf32, #tpu.memory_space<vmem>>, %arg5: memref<8x64xf32, #tpu.memory_space<vmem>>, %arg6: memref<8x8x64xf32, #tpu.memory_space<vmem>>) attributes {dimension_semantics = [#tpu.dimension_semantics<parallel>, #tpu.dimension_semantics<parallel>], iteration_bounds = array<i64: 1, 1>, scalar_prefetch = 0 : i64, scratch_operands = 0 : i64, tpu.core_type = #tpu.core_type<tc>, window_params = [{transform_indices = @transform_0, window_bounds = array<i64: 8, 8, 64>}, {transform_indices = @transform_1, window_bounds = array<i64: 8, 64>}, {transform_indices = @transform_2, window_bounds = array<i64: 8, 64>}, {transform_indices = @transform_3, window_bounds = array<i64: 8, 64>}, {transform_indices = @transform_4, window_bounds = array<i64: 8, 8, 64>}]} {
    %c0 = arith.constant 0 : index
    %c0_0 = arith.constant 0 : index
    %0 = vector.load %arg3[%c0, %c0_0] : memref<8x64xf32, #tpu.memory_space<vmem>>, vector<8x64xf32>
    %c0_1 = arith.constant 0 : index
    %c0_2 = arith.constant 0 : index
    %1 = vector.load %arg4[%c0_1, %c0_2] : memref<8x64xf32, #tpu.memory_space<vmem>>, vector<8x64xf32>
    %c0_3 = arith.constant 0 : index
    %c0_4 = arith.constant 0 : index
    %2 = vector.load %arg5[%c0_3, %c0_4] : memref<8x64xf32, #tpu.memory_space<vmem>>, vector<8x64xf32>
    %c0_5 = arith.constant 0 : index
    %c0_6 = arith.constant 0 : index
    %c0_7 = arith.constant 0 : index
    %3 = vector.load %arg2[%c0_5, %c0_6, %c0_7] : memref<8x8x64xf32, #tpu.memory_space<vmem>>, vector<1x8x64xf32>
    %4 = vector.shape_cast %3 : vector<1x8x64xf32> to vector<8x64xf32>
    %c63_i32 = arith.constant 63 : i32
    %5 = tpu.dynamic_rotate %4 by %c63_i32 dim 1 : vector<8x64xf32>, i32 -> vector<8x64xf32>
    %c1_i32 = arith.constant 1 : i32
    %6 = tpu.dynamic_rotate %4 by %c1_i32 dim 1 : vector<8x64xf32>, i32 -> vector<8x64xf32>
    %7 = arith.mulf %4, %0 : vector<8x64xf32>
    %8 = arith.mulf %5, %1 : vector<8x64xf32>
    %9 = arith.addf %7, %8 : vector<8x64xf32>
    %10 = arith.mulf %6, %2 : vector<8x64xf32>
    %11 = arith.addf %9, %10 : vector<8x64xf32>
    %c0_8 = arith.constant 0 : index
    %c0_9 = arith.constant 0 : index
    %c0_10 = arith.constant 0 : index
    %12 = vector.load %arg6[%c0_8, %c0_9, %c0_10] : memref<8x8x64xf32, #tpu.memory_space<vmem>>, vector<1x8x64xf32>
    %13 = vector.shape_cast %12 : vector<1x8x64xf32> to vector<8x64xf32>
    %14 = vector.shape_cast %11 : vector<8x64xf32> to vector<1x8x64xf32>
    tpu.vector_store %arg6[%c0_8, %c0_9, %c0_10], %14 {strides = array<i32>} : memref<8x8x64xf32, #tpu.memory_space<vmem>>, vector<1x8x64xf32>,
    %c1 = arith.constant 1 : index
    %c0_11 = arith.constant 0 : index
    %c0_12 = arith.constant 0 : index
    %15 = vector.load %arg2[%c1, %c0_11, %c0_12] : memref<8x8x64xf32, #tpu.memory_space<vmem>>, vector<1x8x64xf32>
    %16 = vector.shape_cast %15 : vector<1x8x64xf32> to vector<8x64xf32>
    %c63_i32_13 = arith.constant 63 : i32
    %17 = tpu.dynamic_rotate %16 by %c63_i32_13 dim 1 : vector<8x64xf32>, i32 -> vector<8x64xf32>
    %c1_i32_14 = arith.constant 1 : i32
    %18 = tpu.dynamic_rotate %16 by %c1_i32_14 dim 1 : vector<8x64xf32>, i32 -> vector<8x64xf32>
    %19 = arith.mulf %16, %0 : vector<8x64xf32>
    %20 = arith.mulf %17, %1 : vector<8x64xf32>
    %21 = arith.addf %19, %20 : vector<8x64xf32>
    %22 = arith.mulf %18, %2 : vector<8x64xf32>
    %23 = arith.addf %21, %22 : vector<8x64xf32>
    %c1_15 = arith.constant 1 : index
    %c0_16 = arith.constant 0 : index
    %c0_17 = arith.constant 0 : index
    %24 = vector.load %arg6[%c1_15, %c0_16, %c0_17] : memref<8x8x64xf32, #tpu.memory_space<vmem>>, vector<1x8x64xf32>
    %25 = vector.shape_cast %24 : vector<1x8x64xf32> to vector<8x64xf32>
    %26 = vector.shape_cast %23 : vector<8x64xf32> to vector<1x8x64xf32>
    tpu.vector_store %arg6[%c1_15, %c0_16, %c0_17], %26 {strides = array<i32>} : memref<8x8x64xf32, #tpu.memory_space<vmem>>, vector<1x8x64xf32>,
    %c2 = arith.constant 2 : index
    %c0_18 = arith.constant 0 : index
    %c0_19 = arith.constant 0 : index
    %27 = vector.load %arg2[%c2, %c0_18, %c0_19] : memref<8x8x64xf32, #tpu.memory_space<vmem>>, vector<1x8x64xf32>
    %28 = vector.shape_cast %27 : vector<1x8x64xf32> to vector<8x64xf32>
    %c63_i32_20 = arith.constant 63 : i32
    %29 = tpu.dynamic_rotate %28 by %c63_i32_20 dim 1 : vector<8x64xf32>, i32 -> vector<8x64xf32>
    %c1_i32_21 = arith.constant 1 : i32
    %30 = tpu.dynamic_rotate %28 by %c1_i32_21 dim 1 : vector<8x64xf32>, i32 -> vector<8x64xf32>
    %31 = arith.mulf %28, %0 : vector<8x64xf32>
    %32 = arith.mulf %29, %1 : vector<8x64xf32>
    %33 = arith.addf %31, %32 : vector<8x64xf32>
    %34 = arith.mulf %30, %2 : vector<8x64xf32>
    %35 = arith.addf %33, %34 : vector<8x64xf32>
    %c2_22 = arith.constant 2 : index
    %c0_23 = arith.constant 0 : index
    %c0_24 = arith.constant 0 : index
    %36 = vector.load %arg6[%c2_22, %c0_23, %c0_24] : memref<8x8x64xf32, #tpu.memory_space<vmem>>, vector<1x8x64xf32>
    %37 = vector.shape_cast %36 : vector<1x8x64xf32> to vector<8x64xf32>
    %38 = vector.shape_cast %35 : vector<8x64xf32> to vector<1x8x64xf32>
    tpu.vector_store %arg6[%c2_22, %c0_23, %c0_24], %38 {strides = array<i32>} : memref<8x8x64xf32, #tpu.memory_space<vmem>>, vector<1x8x64xf32>,
    %c3 = arith.constant 3 : index
    %c0_25 = arith.constant 0 : index
    %c0_26 = arith.constant 0 : index
    %39 = vector.load %arg2[%c3, %c0_25, %c0_26] : memref<8x8x64xf32, #tpu.memory_space<vmem>>, vector<1x8x64xf32>
    %40 = vector.shape_cast %39 : vector<1x8x64xf32> to vector<8x64xf32>
    %c63_i32_27 = arith.constant 63 : i32
    %41 = tpu.dynamic_rotate %40 by %c63_i32_27 dim 1 : vector<8x64xf32>, i32 -> vector<8x64xf32>
    %c1_i32_28 = arith.constant 1 : i32
    %42 = tpu.dynamic_rotate %40 by %c1_i32_28 dim 1 : vector<8x64xf32>, i32 -> vector<8x64xf32>
    %43 = arith.mulf %40, %0 : vector<8x64xf32>
    %44 = arith.mulf %41, %1 : vector<8x64xf32>
    %45 = arith.addf %43, %44 : vector<8x64xf32>
    %46 = arith.mulf %42, %2 : vector<8x64xf32>
    %47 = arith.addf %45, %46 : vector<8x64xf32>
    %c3_29 = arith.constant 3 : index
    %c0_30 = arith.constant 0 : index
    %c0_31 = arith.constant 0 : index
    %48 = vector.load %arg6[%c3_29, %c0_30, %c0_31] : memref<8x8x64xf32, #tpu.memory_space<vmem>>, vector<1x8x64xf32>
    %49 = vector.shape_cast %48 : vector<1x8x64xf32> to vector<8x64xf32>
    %50 = vector.shape_cast %47 : vector<8x64xf32> to vector<1x8x64xf32>
    tpu.vector_store %arg6[%c3_29, %c0_30, %c0_31], %50 {strides = array<i32>} : memref<8x8x64xf32, #tpu.memory_space<vmem>>, vector<1x8x64xf32>,
    %c4 = arith.constant 4 : index
    %c0_32 = arith.constant 0 : index
    %c0_33 = arith.constant 0 : index
    %51 = vector.load %arg2[%c4, %c0_32, %c0_33] : memref<8x8x64xf32, #tpu.memory_space<vmem>>, vector<1x8x64xf32>
    %52 = vector.shape_cast %51 : vector<1x8x64xf32> to vector<8x64xf32>
    %c63_i32_34 = arith.constant 63 : i32
    %53 = tpu.dynamic_rotate %52 by %c63_i32_34 dim 1 : vector<8x64xf32>, i32 -> vector<8x64xf32>
    %c1_i32_35 = arith.constant 1 : i32
    %54 = tpu.dynamic_rotate %52 by %c1_i32_35 dim 1 : vector<8x64xf32>, i32 -> vector<8x64xf32>
    %55 = arith.mulf %52, %0 : vector<8x64xf32>
    %56 = arith.mulf %53, %1 : vector<8x64xf32>
    %57 = arith.addf %55, %56 : vector<8x64xf32>
    %58 = arith.mulf %54, %2 : vector<8x64xf32>
    %59 = arith.addf %57, %58 : vector<8x64xf32>
    %c4_36 = arith.constant 4 : index
    %c0_37 = arith.constant 0 : index
    %c0_38 = arith.constant 0 : index
    %60 = vector.load %arg6[%c4_36, %c0_37, %c0_38] : memref<8x8x64xf32, #tpu.memory_space<vmem>>, vector<1x8x64xf32>
    %61 = vector.shape_cast %60 : vector<1x8x64xf32> to vector<8x64xf32>
    %62 = vector.shape_cast %59 : vector<8x64xf32> to vector<1x8x64xf32>
    tpu.vector_store %arg6[%c4_36, %c0_37, %c0_38], %62 {strides = array<i32>} : memref<8x8x64xf32, #tpu.memory_space<vmem>>, vector<1x8x64xf32>,
    %c5 = arith.constant 5 : index
    %c0_39 = arith.constant 0 : index
    %c0_40 = arith.constant 0 : index
    %63 = vector.load %arg2[%c5, %c0_39, %c0_40] : memref<8x8x64xf32, #tpu.memory_space<vmem>>, vector<1x8x64xf32>
    %64 = vector.shape_cast %63 : vector<1x8x64xf32> to vector<8x64xf32>
    %c63_i32_41 = arith.constant 63 : i32
    %65 = tpu.dynamic_rotate %64 by %c63_i32_41 dim 1 : vector<8x64xf32>, i32 -> vector<8x64xf32>
    %c1_i32_42 = arith.constant 1 : i32
    %66 = tpu.dynamic_rotate %64 by %c1_i32_42 dim 1 : vector<8x64xf32>, i32 -> vector<8x64xf32>
    %67 = arith.mulf %64, %0 : vector<8x64xf32>
    %68 = arith.mulf %65, %1 : vector<8x64xf32>
    %69 = arith.addf %67, %68 : vector<8x64xf32>
    %70 = arith.mulf %66, %2 : vector<8x64xf32>
    %71 = arith.addf %69, %70 : vector<8x64xf32>
    %c5_43 = arith.constant 5 : index
    %c0_44 = arith.constant 0 : index
    %c0_45 = arith.constant 0 : index
    %72 = vector.load %arg6[%c5_43, %c0_44, %c0_45] : memref<8x8x64xf32, #tpu.memory_space<vmem>>, vector<1x8x64xf32>
    %73 = vector.shape_cast %72 : vector<1x8x64xf32> to vector<8x64xf32>
    %74 = vector.shape_cast %71 : vector<8x64xf32> to vector<1x8x64xf32>
    tpu.vector_store %arg6[%c5_43, %c0_44, %c0_45], %74 {strides = array<i32>} : memref<8x8x64xf32, #tpu.memory_space<vmem>>, vector<1x8x64xf32>,
    %c6 = arith.constant 6 : index
    %c0_46 = arith.constant 0 : index
    %c0_47 = arith.constant 0 : index
    %75 = vector.load %arg2[%c6, %c0_46, %c0_47] : memref<8x8x64xf32, #tpu.memory_space<vmem>>, vector<1x8x64xf32>
    %76 = vector.shape_cast %75 : vector<1x8x64xf32> to vector<8x64xf32>
    %c63_i32_48 = arith.constant 63 : i32
    %77 = tpu.dynamic_rotate %76 by %c63_i32_48 dim 1 : vector<8x64xf32>, i32 -> vector<8x64xf32>
    %c1_i32_49 = arith.constant 1 : i32
    %78 = tpu.dynamic_rotate %76 by %c1_i32_49 dim 1 : vector<8x64xf32>, i32 -> vector<8x64xf32>
    %79 = arith.mulf %76, %0 : vector<8x64xf32>
    %80 = arith.mulf %77, %1 : vector<8x64xf32>
    %81 = arith.addf %79, %80 : vector<8x64xf32>
    %82 = arith.mulf %78, %2 : vector<8x64xf32>
    %83 = arith.addf %81, %82 : vector<8x64xf32>
    %c6_50 = arith.constant 6 : index
    %c0_51 = arith.constant 0 : index
    %c0_52 = arith.constant 0 : index
    %84 = vector.load %arg6[%c6_50, %c0_51, %c0_52] : memref<8x8x64xf32, #tpu.memory_space<vmem>>, vector<1x8x64xf32>
    %85 = vector.shape_cast %84 : vector<1x8x64xf32> to vector<8x64xf32>
    %86 = vector.shape_cast %83 : vector<8x64xf32> to vector<1x8x64xf32>
    tpu.vector_store %arg6[%c6_50, %c0_51, %c0_52], %86 {strides = array<i32>} : memref<8x8x64xf32, #tpu.memory_space<vmem>>, vector<1x8x64xf32>,
    %c7 = arith.constant 7 : index
    %c0_53 = arith.constant 0 : index
    %c0_54 = arith.constant 0 : index
    %87 = vector.load %arg2[%c7, %c0_53, %c0_54] : memref<8x8x64xf32, #tpu.memory_space<vmem>>, vector<1x8x64xf32>
    %88 = vector.shape_cast %87 : vector<1x8x64xf32> to vector<8x64xf32>
    %c63_i32_55 = arith.constant 63 : i32
    %89 = tpu.dynamic_rotate %88 by %c63_i32_55 dim 1 : vector<8x64xf32>, i32 -> vector<8x64xf32>
    %c1_i32_56 = arith.constant 1 : i32
    %90 = tpu.dynamic_rotate %88 by %c1_i32_56 dim 1 : vector<8x64xf32>, i32 -> vector<8x64xf32>
    %91 = arith.mulf %88, %0 : vector<8x64xf32>
    %92 = arith.mulf %89, %1 : vector<8x64xf32>
    %93 = arith.addf %91, %92 : vector<8x64xf32>
    %94 = arith.mulf %90, %2 : vector<8x64xf32>
    %95 = arith.addf %93, %94 : vector<8x64xf32>
    %c7_57 = arith.constant 7 : index
    %c0_58 = arith.constant 0 : index
    %c0_59 = arith.constant 0 : index
    %96 = vector.load %arg6[%c7_57, %c0_58, %c0_59] : memref<8x8x64xf32, #tpu.memory_space<vmem>>, vector<1x8x64xf32>
    %97 = vector.shape_cast %96 : vector<1x8x64xf32> to vector<8x64xf32>
    %98 = vector.shape_cast %95 : vector<8x64xf32> to vector<1x8x64xf32>
    tpu.vector_store %arg6[%c7_57, %c0_58, %c0_59], %98 {strides = array<i32>} : memref<8x8x64xf32, #tpu.memory_space<vmem>>, vector<1x8x64xf32>,
    return
  }
  func.func @transform_0(%arg0: i32, %arg1: i32) -> (i32, i32, i32) {
    %c0_i32 = arith.constant 0 : i32
    %c0_i32_0 = arith.constant 0 : i32
    return %arg1, %arg0, %c0_i32 : i32, i32, i32
  }
  func.func @transform_1(%arg0: i32, %arg1: i32) -> (i32, i32) {
    %c0_i32 = arith.constant 0 : i32
    %c0_i32_0 = arith.constant 0 : i32
    return %arg0, %c0_i32 : i32, i32
  }
  func.func @transform_2(%arg0: i32, %arg1: i32) -> (i32, i32) {
    %c0_i32 = arith.constant 0 : i32
    %c0_i32_0 = arith.constant 0 : i32
    return %arg0, %c0_i32 : i32, i32
  }
  func.func @transform_3(%arg0: i32, %arg1: i32) -> (i32, i32) {
    %c0_i32 = arith.constant 0 : i32
    %c0_i32_0 = arith.constant 0 : i32
    return %arg0, %c0_i32 : i32, i32
  }
  func.func @transform_4(%arg0: i32, %arg1: i32) -> (i32, i32, i32) {
    %c0_i32 = arith.constant 0 : i32
    %c0_i32_0 = arith.constant 0 : i32
    return %arg1, %arg0, %c0_i32 : i32, i32, i32
  }
}

</mosaic_0001>

<llo_original>
// kernel: tpu_custom_call.1
$region0: #{tpu_custom_call.1}
  #allocation0 [shape = 'u32[]', space=smem, size = 0x4, offset = 0x4, fixed_abs, tag = 'smem constant byte address 0x4 - core index']
  #allocation1 [shape = 'u32[144,128]{1,0:T(1,128)}', space=vmem, size = 0x12000, scoped, tag = 'internal scratch']
  %s0 = inlined_call_operand.hbm [shape: f32[8,8,64], index: 0, kind: input, shape index: {}]
  %s1 = inlined_call_operand.hbm [shape: f32[8,64], index: 1, kind: input, shape index: {}]
  %s2 = inlined_call_operand.hbm [shape: f32[8,64], index: 2, kind: input, shape index: {}]
  %s3 = inlined_call_operand.vmem [shape: f32[8,64], index: 3, kind: input, shape index: {}]
  %s4 = inlined_call_operand.hbm [shape: f32[8,8,64], index: 4, kind: output, shape index: {}]
  %s5 = sld [smem:[#allocation0]]
  $region38: #{tpu_custom_call.1} parent=0
    _
  %s7 = ssub.s32 1, %s5
  %s8 = scalar_select 0, %s7, %s5
  $region1: #{tpu_custom_call.1} parent=0
    #allocation2 [shape = 'u8[32768]{0}', space=vmem, size = 0x8000, scoped, tag = 'input window, operand 0, single buffered']
    #allocation3 [shape = 's32[1]{0}', space=sflag, size = 0x4, scoped, tag = 'scoped memory for tpu_custom_call.1']
    #allocation4 [shape = 's32[1]{0}', space=sflag, size = 0x4, scoped, tag = 'scoped memory for tpu_custom_call.1']
    #allocation5 [shape = 'u8[4096]{0}', space=vmem, size = 0x1000, scoped, tag = 'input window, operand 1, single buffered']
    #allocation6 [shape = 's32[1]{0}', space=sflag, size = 0x4, scoped, tag = 'scoped memory for tpu_custom_call.1']
    #allocation7 [shape = 'u8[4096]{0}', space=vmem, size = 0x1000, scoped, tag = 'input window, operand 2, single buffered']
    #allocation8 [shape = 'u8[32768]{0}', space=vmem, size = 0x8000, scoped, tag = 'output window, operand 0, single buffered']
    %9 = vsyncpa [#allocation3], 0
    %10 = vsyncpa [#allocation6], 0
    %11 = vsyncpa [#allocation4], 0
    // Predicated region
    $region2: #{tpu_custom_call.1} parent=1 // pred_check
      _
    $region3: #{tpu_custom_call.1} parent=1 // pred_check_branch
      %13 = sbr.rel (0) target = $region5
    $region4: #{tpu_custom_call.1} parent=1 // pred_region
      %s15 = ssub.s32 1024, 1024
      %16 = vsyncadd [#allocation3], %s15
      %s17 = sshll.u32 [#allocation2], 4
      %s18 = int_to_ptr.vmem [resolvable:$true] %s17
      %23 = dma.hbm_to_vmem [thread:$0]  %s0, 1024, %s18, [#allocation3], 128, 128, 8
    $region5: #{tpu_custom_call.1} parent=1 // pred_fallthru
      _
    // Predicated region
    $region6: #{tpu_custom_call.1} parent=1 // pred_check
      _
    $region7: #{tpu_custom_call.1} parent=1 // pred_check_branch
      %25 = sbr.rel (0) target = $region9
    $region8: #{tpu_custom_call.1} parent=1 // pred_region
      %s27 = ssub.s32 128, 128
      %28 = vsyncadd [#allocation6], %s27
      %s30 = sshll.u32 [#allocation5], 4
      %s31 = int_to_ptr.vmem [resolvable:$true] %s30
      %33 = dma.hbm_to_vmem [thread:$0]  %s1, 128, %s31, [#allocation6]
    $region9: #{tpu_custom_call.1} parent=1 // pred_fallthru
      _
    // Predicated region
    $region10: #{tpu_custom_call.1} parent=1 // pred_check
      _
    $region11: #{tpu_custom_call.1} parent=1 // pred_check_branch
      %35 = sbr.rel (0) target = $region13
    $region12: #{tpu_custom_call.1} parent=1 // pred_region
      %s37 = ssub.s32 128, 128
      %38 = vsyncadd [#allocation6], %s37
      %s40 = sshll.u32 [#allocation7], 4
      %s41 = int_to_ptr.vmem [resolvable:$true] %s40
      %43 = dma.hbm_to_vmem [thread:$0]  %s2, 128, %s41, [#allocation6]
    $region13: #{tpu_custom_call.1} parent=1 // pred_fallthru
      _
    // Predicated region
    $region14: #{tpu_custom_call.1} parent=1 // pred_check
      _
    $region15: #{tpu_custom_call.1} parent=1 // pred_check_branch
      %45 = sbr.rel (0) target = $region17
    $region16: #{tpu_custom_call.1} parent=1 // pred_region
      _
    $region17: #{tpu_custom_call.1} parent=1 // pred_fallthru
      _
    // Predicated region
    $region18: #{tpu_custom_call.1} parent=1 // pred_check
      _
    $region19: #{tpu_custom_call.1} parent=1 // pred_check_branch
      %47 = sbr.rel (0) target = $region21
    $region20: #{tpu_custom_call.1} parent=1 // pred_region
      %48 = dma.done [#allocation3], 1024
    $region21: #{tpu_custom_call.1} parent=1 // pred_fallthru
      _
    // Predicated region
    $region22: #{tpu_custom_call.1} parent=1 // pred_check
      _
    $region23: #{tpu_custom_call.1} parent=1 // pred_check_branch
      %50 = sbr.rel (0) target = $region25
    $region24: #{tpu_custom_call.1} parent=1 // pred_region
      %51 = dma.done [#allocation6], 128
    $region25: #{tpu_custom_call.1} parent=1 // pred_fallthru
      _
    // Predicated region
    $region26: #{tpu_custom_call.1} parent=1 // pred_check
      _
    $region27: #{tpu_custom_call.1} parent=1 // pred_check_branch
      %53 = sbr.rel (0) target = $region29
    $region28: #{tpu_custom_call.1} parent=1 // pred_region
      %54 = dma.done [#allocation6], 128
    $region29: #{tpu_custom_call.1} parent=1 // pred_fallthru
      _
    %v55 = vld [vmem:[#allocation5] sm:$0xff]
    %v56 = vld [vmem:[#allocation7] sm:$0xff]
    %v57 = vld [vmem:[%s3] sm:$0xff]
    %v58 = vld [vmem:[#allocation2] sm:$0xff]
    %vm59 = vcmask 1048064
    %60 = vrot.lane.b32.xlu0 %v58, 64
    %v61 = vpop.permute.xlu0 %60
    %v62 = vsel %vm59, %v61, %v58
    %63 = vrot.lane.b32.xlu0 %v62, 64
    %v64 = vpop.permute.xlu0 %63
    %v65 = vsel %vm59, %v64, %v58
    %v66 = vmul.f32 %v58, %v55
    %68 = vrot.lane.b32.xlu0 %v56, 1
    %v69 = vpop.permute.xlu0 %68
    %v71 = vmul.f32 %v65, %v69
    %73 = vrot.lane.b32.xlu0 %v71, 127
    %v74 = vpop.permute.xlu0 %73
    %v76 = vadd.f32 %v66, %v74
    %78 = vrot.lane.b32.xlu0 %v57, 63
    %v79 = vpop.permute.xlu0 %78
    %v81 = vmul.f32 %v65, %v79
    %83 = vrot.lane.b32.xlu0 %v81, 65
    %v84 = vpop.permute.xlu0 %83
    %v86 = vadd.f32 %v76, %v84
    %vm87 = vcmask 523264
    %88 = vst.msk [vmem:[#allocation8] sm:$0xff] %vm87, %v86
    %s89 = scalar_lea.vmem [#allocation2], 8
    %v90 = vld [vmem:[%s89] sm:$0xff]
    %91 = vrot.lane.b32.xlu0 %v90, 64
    %v92 = vpop.permute.xlu0 %91
    %v93 = vsel %vm59, %v92, %v90
    %94 = vrot.lane.b32.xlu0 %v93, 64
    %v95 = vpop.permute.xlu0 %94
    %v96 = vsel %vm59, %v95, %v90
    %v97 = vmul.f32 %v90, %v55
    %v98 = vmul.f32 %v96, %v69
    %100 = vrot.lane.b32.xlu0 %v98, 127
    %v101 = vpop.permute.xlu0 %100
    %v103 = vadd.f32 %v97, %v101
    %v104 = vmul.f32 %v96, %v79
    %106 = vrot.lane.b32.xlu0 %v104, 65
    %v107 = vpop.permute.xlu0 %106
    %v109 = vadd.f32 %v103, %v107
    %s110 = scalar_lea.vmem [#allocation8], 8
    %111 = vst.msk [vmem:[%s110] sm:$0xff] %vm87, %v109
    %s112 = scalar_lea.vmem [#allocation2], 16
    %v113 = vld [vmem:[%s112] sm:$0xff]
    %114 = vrot.lane.b32.xlu0 %v113, 64
    %v115 = vpop.permute.xlu0 %114
    %v116 = vsel %vm59, %v115, %v113
    %117 = vrot.lane.b32.xlu0 %v116, 64
    %v118 = vpop.permute.xlu0 %117
    %v119 = vsel %vm59, %v118, %v113
    %v120 = vmul.f32 %v113, %v55
    %v121 = vmul.f32 %v119, %v69
    %123 = vrot.lane.b32.xlu0 %v121, 127
    %v124 = vpop.permute.xlu0 %123
    %v126 = vadd.f32 %v120, %v124
    %v127 = vmul.f32 %v119, %v79
    %129 = vrot.lane.b32.xlu0 %v127, 65
    %v130 = vpop.permute.xlu0 %129
    %v132 = vadd.f32 %v126, %v130
    %s133 = scalar_lea.vmem [#allocation8], 16
    %134 = vst.msk [vmem:[%s133] sm:$0xff] %vm87, %v132
    %s135 = scalar_lea.vmem [#allocation2], 24
    %v136 = vld [vmem:[%s135] sm:$0xff]
    %137 = vrot.lane.b32.xlu0 %v136, 64
    %v138 = vpop.permute.xlu0 %137
    %v139 = vsel %vm59, %v138, %v136
    %140 = vrot.lane.b32.xlu0 %v139, 64
    %v141 = vpop.permute.xlu0 %140
    %v142 = vsel %vm59, %v141, %v136
    %v143 = vmul.f32 %v136, %v55
    %v144 = vmul.f32 %v142, %v69
    %146 = vrot.lane.b32.xlu0 %v144, 127
    %v147 = vpop.permute.xlu0 %146
    %v149 = vadd.f32 %v143, %v147
    %v150 = vmul.f32 %v142, %v79
    %152 = vrot.lane.b32.xlu0 %v150, 65
    %v153 = vpop.permute.xlu0 %152
    %v155 = vadd.f32 %v149, %v153
    %s156 = scalar_lea.vmem [#allocation8], 24
    %157 = vst.msk [vmem:[%s156] sm:$0xff] %vm87, %v155
    %s158 = scalar_lea.vmem [#allocation2], 32
    %v159 = vld [vmem:[%s158] sm:$0xff]
    %160 = vrot.lane.b32.xlu0 %v159, 64
    %v161 = vpop.permute.xlu0 %160
    %v162 = vsel %vm59, %v161, %v159
    %163 = vrot.lane.b32.xlu0 %v162, 64
    %v164 = vpop.permute.xlu0 %163
    %v165 = vsel %vm59, %v164, %v159
    %v166 = vmul.f32 %v159, %v55
    %v167 = vmul.f32 %v165, %v69
    %169 = vrot.lane.b32.xlu0 %v167, 127
    %v170 = vpop.permute.xlu0 %169
    %v172 = vadd.f32 %v166, %v170
    %v173 = vmul.f32 %v165, %v79
    %175 = vrot.lane.b32.xlu0 %v173, 65
    %v176 = vpop.permute.xlu0 %175
    %v178 = vadd.f32 %v172, %v176
    %s179 = scalar_lea.vmem [#allocation8], 32
    %180 = vst.msk [vmem:[%s179] sm:$0xff] %vm87, %v178
    %s181 = scalar_lea.vmem [#allocation2], 40
    %v182 = vld [vmem:[%s181] sm:$0xff]
    %183 = vrot.lane.b32.xlu0 %v182, 64
    %v184 = vpop.permute.xlu0 %183
    %v185 = vsel %vm59, %v184, %v182
    %186 = vrot.lane.b32.xlu0 %v185, 64
    %v187 = vpop.permute.xlu0 %186
    %v188 = vsel %vm59, %v187, %v182
    %v189 = vmul.f32 %v182, %v55
    %v190 = vmul.f32 %v188, %v69
    %192 = vrot.lane.b32.xlu0 %v190, 127
    %v193 = vpop.permute.xlu0 %192
    %v195 = vadd.f32 %v189, %v193
    %v196 = vmul.f32 %v188, %v79
    %198 = vrot.lane.b32.xlu0 %v196, 65
    %v199 = vpop.permute.xlu0 %198
    %v201 = vadd.f32 %v195, %v199
    %s202 = scalar_lea.vmem [#allocation8], 40
    %203 = vst.msk [vmem:[%s202] sm:$0xff] %vm87, %v201
    %s204 = scalar_lea.vmem [#allocation2], 48
    %v205 = vld [vmem:[%s204] sm:$0xff]
    %206 = vrot.lane.b32.xlu0 %v205, 64
    %v207 = vpop.permute.xlu0 %206
    %v208 = vsel %vm59, %v207, %v205
    %209 = vrot.lane.b32.xlu0 %v208, 64
    %v210 = vpop.permute.xlu0 %209
    %v211 = vsel %vm59, %v210, %v205
    %v212 = vmul.f32 %v205, %v55
    %v213 = vmul.f32 %v211, %v69
    %215 = vrot.lane.b32.xlu0 %v213, 127
    %v216 = vpop.permute.xlu0 %215
    %v218 = vadd.f32 %v212, %v216
    %v219 = vmul.f32 %v211, %v79
    %221 = vrot.lane.b32.xlu0 %v219, 65
    %v222 = vpop.permute.xlu0 %221
    %v224 = vadd.f32 %v218, %v222
    %s225 = scalar_lea.vmem [#allocation8], 48
    %226 = vst.msk [vmem:[%s225] sm:$0xff] %vm87, %v224
    %s227 = scalar_lea.vmem [#allocation2], 56
    %v228 = vld [vmem:[%s227] sm:$0xff]
    %229 = vrot.lane.b32.xlu0 %v228, 64
    %v230 = vpop.permute.xlu0 %229
    %v231 = vsel %vm59, %v230, %v228
    %232 = vrot.lane.b32.xlu0 %v231, 64
    %v233 = vpop.permute.xlu0 %232
    %v234 = vsel %vm59, %v233, %v228
    %v235 = vmul.f32 %v228, %v55
    %v236 = vmul.f32 %v234, %v69
    %238 = vrot.lane.b32.xlu0 %v236, 127
    %v239 = vpop.permute.xlu0 %238
    %v241 = vadd.f32 %v235, %v239
    %v242 = vmul.f32 %v234, %v79
    %244 = vrot.lane.b32.xlu0 %v242, 65
    %v245 = vpop.permute.xlu0 %244
    %v247 = vadd.f32 %v241, %v245
    %s248 = scalar_lea.vmem [#allocation8], 56
    %249 = vst.msk [vmem:[%s248] sm:$0xff] %vm87, %v247
    // Predicated region
    $region30: #{tpu_custom_call.1} parent=1 // pred_check
      _
    $region31: #{tpu_custom_call.1} parent=1 // pred_check_branch
      %251 = sbr.rel (0) target = $region33
    $region32: #{tpu_custom_call.1} parent=1 // pred_region
      %s253 = ssub.s32 1024, 1024
      %254 = vsyncadd [#allocation4], %s253
      %s255 = sshll.u32 [#allocation8], 4
      %s256 = int_to_ptr.vmem [resolvable:$true] %s255
      %261 = dma.vmem_to_hbm [thread:$0]  %s256, 1024, %s4, [#allocation4], 128, 128, 8
    $region33: #{tpu_custom_call.1} parent=1 // pred_fallthru
      _
    // Predicated region
    $region34: #{tpu_custom_call.1} parent=1 // pred_check
      _
    $region35: #{tpu_custom_call.1} parent=1 // pred_check_branch
      %263 = sbr.rel (0) target = $region37
    $region36: #{tpu_custom_call.1} parent=1 // pred_region
      %264 = dma.done [#allocation4], 1024
    $region37: #{tpu_custom_call.1} parent=1 // pred_fallthru
      _
    %265 = vsyncpa [#allocation3], 1
    %266 = vsyncpa [#allocation6], 1
    %267 = vsyncpa [#allocation4], 1

</llo_original>
